<compile_context>
chip_gen: v6e
topology: v6e:2x2x1
jax: 0.10.0
libtpu: 0.0.40
codegen_flags: <defaults>
</compile_context>

<pallas_src>
import functools

import jax
import jax.numpy as jnp
from jax import lax
from jax.experimental import pallas as pl
from jax.experimental.pallas import tpu as pltpu

# ----------------------------- config (small) ------------------------------
HIDDEN = 32
NUM_HEADS = 4
NUM_KV_HEADS = 2
HEAD_DIM = HIDDEN // NUM_HEADS            # 8
HALF = HEAD_DIM // 2                      # 4
GROUP = NUM_HEADS // NUM_KV_HEADS         # 2
Q_SIZE = NUM_HEADS * HEAD_DIM             # 32
KV_SIZE = NUM_KV_HEADS * HEAD_DIM         # 16
QKV_OUT = Q_SIZE + 2 * KV_SIZE            # 64
SEQ = 8
MAX_POS = 64                              # toy rotary-cache length (>= SEQ)
ROPE_THETA = 10000.0
SCALE = HEAD_DIM ** -0.5
OUT_PAD = 128                             # lane-dense output slab width


# --------------------------- fused attention kernel -------------------------
def _mixtral_attention_kernel(pos_ref, x_ref, wqkv_ref, wo_ref, rope_ref, o_ref,
                              *, num_heads, num_kv_heads, head_dim, scale):
    seq = x_ref.shape[0]
    q_size = num_heads * head_dim
    kv_size = num_kv_heads * head_dim
    group = num_heads // num_kv_heads
    half = head_dim // 2

    # RoPE table row-gather driven by scalar-prefetched positions (SMEM scalars +
    # dynamic sublane slices of the VMEM-resident fused [cos|sin_lo|sin_hi] table).
    rows = [rope_ref[pl.ds(pos_ref[i], 1), :] for i in range(seq)]
    rope = jnp.concatenate(rows, axis=0)                         # (S, 3*q_size) f32
    cos = rope[:, :q_size]
    sin_lo = rope[:, q_size:2 * q_size]                          # -sin on first half-lanes, 0 on second
    sin_hi = rope[:, 2 * q_size:]                                # +sin on second half-lanes, 0 on first

    # Fused QKV projection: bf16 MXU operands, f32 accumulation.
    x = x_ref[...].astype(jnp.bfloat16)
    qkv = jnp.dot(x, wqkv_ref[...], preferred_element_type=jnp.float32)    # (S, 64)
    q = qkv[:, :q_size]
    k = qkv[:, q_size:q_size + kv_size]
    v = qkv[:, q_size + kv_size:]

    # RoPE in the per-head half-split (NeoX) layout (Wqkv q/k columns were permuted
    # once at load time; the permutation cancels in q.k^T).  rotate_half == two
    # static lane rolls; the sign and the "other half -> zero" masking are folded
    # into the sin_lo / sin_hi tables, so cross-head / wrap lanes contribute 0.
    def _rope(t, c, s_lo, s_hi):
        left = jnp.concatenate([t[:, half:], t[:, :half]], axis=1)     # roll left by half
        right = jnp.concatenate([t[:, -half:], t[:, :-half]], axis=1)  # roll right by half
        return t * c + left * s_lo + right * s_hi

    q = _rope(q, cos, sin_lo, sin_hi) * scale                    # fold attn scale into q once
    k = _rope(k, cos[:, :kv_size], sin_lo[:, :kv_size], sin_hi[:, :kv_size])

    q = q.astype(jnp.bfloat16)
    k = k.astype(jnp.bfloat16)
    v = v.astype(jnp.bfloat16)

    # Additive causal mask, built once and tiled over the GQA-stacked sublane axis.
    row = lax.broadcasted_iota(jnp.int32, (seq, seq), 0)
    col = lax.broadcasted_iota(jnp.int32, (seq, seq), 1)
    neg = jnp.where(col <= row, 0.0, -1e30).astype(jnp.float32)
    mask_add = jnp.concatenate([neg] * group, axis=0)            # (group*S, S)

    # Attention: one score matmul per KV head; the `group` query heads that share it
    # are stacked along sublanes (fills more MXU rows, halves the unrolled loop).
    head_out = [None] * num_heads
    for g in range(num_kv_heads):
        q_g = jnp.concatenate(
            [q[:, (g * group + j) * head_dim:(g * group + j + 1) * head_dim]
             for j in range(group)], axis=0)                     # (group*S, D)
        k_g = k[:, g * head_dim:(g + 1) * head_dim]              # (S, D)
        v_g = v[:, g * head_dim:(g + 1) * head_dim]              # (S, D)
        s = lax.dot_general(q_g, k_g, (((1,), (1,)), ((), ())),  # q @ k^T, NT form
                            preferred_element_type=jnp.float32)  # (group*S, S)
        s = s + mask_add
        s = s - jnp.max(s, axis=-1, keepdims=True)
        p = jnp.exp(s)
        p = p * pl.reciprocal(jnp.sum(p, axis=-1, keepdims=True), approx=True)
        o_g = jnp.dot(p.astype(jnp.bfloat16), v_g,
                      preferred_element_type=jnp.float32)        # (group*S, D)
        for j in range(group):                                   # un-stack (sublane-aligned)
            head_out[g * group + j] = o_g[j * seq:(j + 1) * seq, :]

    # Single full-K output projection over the concatenated head outputs, into a
    # lane-dense (128-wide, zero-padded) output slab -> unmasked vector stores.
    attn = jnp.concatenate(head_out, axis=1).astype(jnp.bfloat16)          # (S, q_size)
    out = jnp.dot(attn, wo_ref[...], preferred_element_type=jnp.float32)   # (S, OUT_PAD)
    o_ref[...] = out.astype(o_ref.dtype)


# --------------------------- init-time precomputation ------------------------
def _half_split_perm(num_heads, head_dim):
    """Per-head permutation interleaved(GPT-J) -> half-split(NeoX): [0,2,..,1,3,..]."""
    per_head = jnp.concatenate([jnp.arange(0, head_dim, 2), jnp.arange(1, head_dim, 2)])
    return (jnp.arange(num_heads)[:, None] * head_dim + per_head[None, :]).reshape(-1)


def _build_rope_cache(max_position, head_dim, num_heads, theta):
    """Fused [cos | sin_lo | sin_hi] table in the flat half-split per-head layout."""
    inv_freq = 1.0 / (theta ** (jnp.arange(0, head_dim, 2, dtype=jnp.float32) / head_dim))
    t = jnp.arange(max_position, dtype=jnp.float32)
    fr = t[:, None] * inv_freq[None, :]                          # (P, D/2)
    cos_h, sin_h = jnp.cos(fr), jnp.sin(fr)
    zeros = jnp.zeros_like(sin_h)
    cos = jnp.tile(jnp.concatenate([cos_h, cos_h], axis=-1), (1, num_heads))
    sin_lo = jnp.tile(jnp.concatenate([-sin_h, zeros], axis=-1), (1, num_heads))
    sin_hi = jnp.tile(jnp.concatenate([zeros, sin_h], axis=-1), (1, num_heads))
    return jnp.concatenate([cos, sin_lo, sin_hi], axis=-1)       # (P, 3*num_heads*D)


def init_params(key):
    """Torch-layout [out, in] weights, stored bf16 (like real Mixtral checkpoints)."""
    k1, k2 = jax.random.split(key)
    wqkv = (0.02 * jax.random.normal(k1, (QKV_OUT, HIDDEN), jnp.float32)).astype(jnp.bfloat16)
    wo = (0.02 * jax.random.normal(k2, (HIDDEN, Q_SIZE), jnp.float32)).astype(jnp.bfloat16)
    return {"wqkv": wqkv, "wo": wo}


def prepare_kernel_params(raw):
    """One-time load-time transforms: transpose, interleaved->half-split permutation
    of the q/k columns (cancels in q.k^T), 128-lane zero-pad of Wo^T, bf16 MXU
    operands, fused RoPE table."""
    wqkv_t = raw["wqkv"].astype(jnp.float32).T                   # (H, QKV_OUT)
    perm_q = _half_split_perm(NUM_HEADS, HEAD_DIM)
    perm_k = _half_split_perm(NUM_KV_HEADS, HEAD_DIM)
    q_cols = wqkv_t[:, :Q_SIZE][:, perm_q]
    k_cols = wqkv_t[:, Q_SIZE:Q_SIZE + KV_SIZE][:, perm_k]
    v_cols = wqkv_t[:, Q_SIZE + KV_SIZE:]
    wqkv_t = jnp.concatenate([q_cols, k_cols, v_cols], axis=1).astype(jnp.bfloat16)
    wo_t = jnp.pad(raw["wo"].astype(jnp.float32).T,
                   ((0, 0), (0, OUT_PAD - HIDDEN))).astype(jnp.bfloat16)   # (Q_SIZE, 128)
    rope = _build_rope_cache(MAX_POS, HEAD_DIM, NUM_HEADS, ROPE_THETA)
    return {"wqkv_t": wqkv_t, "wo_t": wo_t, "rope": rope}


# ------------------------------- forward glue --------------------------------
def mixtral_attention(positions, hidden_states, params):
    """positions: (S,) int32; hidden_states: (S, HIDDEN) -> (S, HIDDEN)."""
    S, H = hidden_states.shape
    kernel = functools.partial(
        _mixtral_attention_kernel,
        num_heads=NUM_HEADS, num_kv_heads=NUM_KV_HEADS,
        head_dim=HEAD_DIM, scale=SCALE)

    out_pad = pl.pallas_call(
        kernel,
        out_shape=jax.ShapeDtypeStruct((S, OUT_PAD), hidden_states.dtype),
        grid_spec=pltpu.PrefetchScalarGridSpec(
            num_scalar_prefetch=1,                                # positions -> SMEM
            grid=(1,),
            in_specs=[
                pl.BlockSpec((S, H), lambda i, pos: (0, 0)),                  # x
                pl.BlockSpec((H, QKV_OUT), lambda i, pos: (0, 0)),            # Wqkv^T (permuted, bf16)
                pl.BlockSpec((Q_SIZE, OUT_PAD), lambda i, pos: (0, 0)),       # Wo^T (0-padded lanes, bf16)
                pl.BlockSpec((MAX_POS, 3 * Q_SIZE), lambda i, pos: (0, 0)),   # rope [cos|sin_lo|sin_hi]
            ],
            out_specs=pl.BlockSpec((S, OUT_PAD), lambda i, pos: (0, 0)),
        ),
        compiler_params=pltpu.CompilerParams(
            dimension_semantics=("arbitrary",)),
    )(positions, hidden_states, params["wqkv_t"], params["wo_t"], params["rope"])
    return out_pad[:, :H]


# ---------------------------- pure-JAX reference -----------------------------
def _reference_forward(positions, hidden_states, raw):
    """Textbook path on the raw torch-layout weights: split heads, interleaved RoPE,
    masked softmax, f32 everywhere."""
    x = hidden_states.astype(jnp.float32)
    wqkv_t = raw["wqkv"].astype(jnp.float32).T
    wo_t = raw["wo"].astype(jnp.float32).T
    qkv = x @ wqkv_t
    q = qkv[:, :Q_SIZE].reshape(-1, NUM_HEADS, HEAD_DIM)
    k = qkv[:, Q_SIZE:Q_SIZE + KV_SIZE].reshape(-1, NUM_KV_HEADS, HEAD_DIM)
    v = qkv[:, Q_SIZE + KV_SIZE:].reshape(-1, NUM_KV_HEADS, HEAD_DIM)

    inv_freq = 1.0 / (ROPE_THETA ** (jnp.arange(0, HEAD_DIM, 2, dtype=jnp.float32) / HEAD_DIM))
    fr = positions.astype(jnp.float32)[:, None] * inv_freq[None, :]
    cos, sin = jnp.cos(fr)[:, None, :], jnp.sin(fr)[:, None, :]

    def rope(t):
        x1, x2 = t[..., 0::2], t[..., 1::2]
        o1, o2 = x1 * cos - x2 * sin, x2 * cos + x1 * sin
        return jnp.stack([o1, o2], axis=-1).reshape(t.shape)

    q, k = rope(q), rope(k)
    group = NUM_HEADS // NUM_KV_HEADS
    k = jnp.repeat(k, group, axis=1)
    v = jnp.repeat(v, group, axis=1)
    s = jnp.einsum("qhd,khd->hqk", q, k) * SCALE
    mask = jnp.tril(jnp.ones((s.shape[-2], s.shape[-1]), bool))
    s = jnp.where(mask[None], s, -jnp.inf)
    p = jax.nn.softmax(s, axis=-1)
    attn = jnp.einsum("hqk,khd->qhd", p, v).reshape(-1, Q_SIZE)
    return attn @ wo_t


if __name__ == "__main__":
    key = jax.random.PRNGKey(0)
    pkey, xkey = jax.random.split(key)
    raw = init_params(pkey)
    params = prepare_kernel_params(raw)
    x = jax.random.normal(xkey, (SEQ, HIDDEN), jnp.float32)
    positions = jnp.arange(SEQ, dtype=jnp.int32)

    out = jax.jit(mixtral_attention)(positions, x, params)
    jax.block_until_ready(out)
    assert out.shape == (SEQ, HIDDEN) and out.dtype == jnp.float32

    ref = _reference_forward(positions, x, raw)
    err = float(jnp.max(jnp.abs(out - ref)))
    assert jnp.allclose(out, ref, atol=2e-3, rtol=2e-2), err
    print("KERNEL_OK")
</pallas_src>

<mosaic_0001>
module attributes {stable_mosaic.version = 11 : i64} {
  func.func @_mixtral_attention_kernel(%arg0: i32, %arg1: memref<8xi32, #tpu.memory_space<smem>>, %arg2: memref<8x32xf32, #tpu.memory_space<vmem>>, %arg3: memref<32x64xbf16, #tpu.memory_space<vmem>>, %arg4: memref<32x128xbf16, #tpu.memory_space<vmem>>, %arg5: memref<64x96xf32, #tpu.memory_space<vmem>>, %arg6: memref<8x128xf32, #tpu.memory_space<vmem>>) attributes {dimension_semantics = [#tpu.dimension_semantics<arbitrary>], iteration_bounds = array<i64: 1>, scalar_prefetch = 1 : i64, scratch_operands = 0 : i64, tpu.core_type = #tpu.core_type<tc>, window_params = [{pipeline_mode = #tpu.pipeline_mode<synchronous>, transform_indices = @transform_0, window_bounds = array<i64: 8, 32>}, {pipeline_mode = #tpu.pipeline_mode<synchronous>, transform_indices = @transform_1, window_bounds = array<i64: 32, 64>}, {pipeline_mode = #tpu.pipeline_mode<synchronous>, transform_indices = @transform_2, window_bounds = array<i64: 32, 128>}, {pipeline_mode = #tpu.pipeline_mode<synchronous>, transform_indices = @transform_3, window_bounds = array<i64: 64, 96>}, {pipeline_mode = #tpu.pipeline_mode<synchronous>, transform_indices = @transform_4, window_bounds = array<i64: 8, 128>}]} {
    %c0 = arith.constant 0 : index
    %0 = memref.load %arg1[%c0] : memref<8xi32, #tpu.memory_space<smem>>
    %1 = arith.index_cast %0 : i32 to index
    %c0_0 = arith.constant 0 : index
    %2 = vector.load %arg5[%1, %c0_0] : memref<64x96xf32, #tpu.memory_space<vmem>>, vector<1x96xf32>
    %c1 = arith.constant 1 : index
    %3 = memref.load %arg1[%c1] : memref<8xi32, #tpu.memory_space<smem>>
    %4 = arith.index_cast %3 : i32 to index
    %c0_1 = arith.constant 0 : index
    %5 = vector.load %arg5[%4, %c0_1] : memref<64x96xf32, #tpu.memory_space<vmem>>, vector<1x96xf32>
    %c2 = arith.constant 2 : index
    %6 = memref.load %arg1[%c2] : memref<8xi32, #tpu.memory_space<smem>>
    %7 = arith.index_cast %6 : i32 to index
    %c0_2 = arith.constant 0 : index
    %8 = vector.load %arg5[%7, %c0_2] : memref<64x96xf32, #tpu.memory_space<vmem>>, vector<1x96xf32>
    %c3 = arith.constant 3 : index
    %9 = memref.load %arg1[%c3] : memref<8xi32, #tpu.memory_space<smem>>
    %10 = arith.index_cast %9 : i32 to index
    %c0_3 = arith.constant 0 : index
    %11 = vector.load %arg5[%10, %c0_3] : memref<64x96xf32, #tpu.memory_space<vmem>>, vector<1x96xf32>
    %c4 = arith.constant 4 : index
    %12 = memref.load %arg1[%c4] : memref<8xi32, #tpu.memory_space<smem>>
    %13 = arith.index_cast %12 : i32 to index
    %c0_4 = arith.constant 0 : index
    %14 = vector.load %arg5[%13, %c0_4] : memref<64x96xf32, #tpu.memory_space<vmem>>, vector<1x96xf32>
    %c5 = arith.constant 5 : index
    %15 = memref.load %arg1[%c5] : memref<8xi32, #tpu.memory_space<smem>>
    %16 = arith.index_cast %15 : i32 to index
    %c0_5 = arith.constant 0 : index
    %17 = vector.load %arg5[%16, %c0_5] : memref<64x96xf32, #tpu.memory_space<vmem>>, vector<1x96xf32>
    %c6 = arith.constant 6 : index
    %18 = memref.load %arg1[%c6] : memref<8xi32, #tpu.memory_space<smem>>
    %19 = arith.index_cast %18 : i32 to index
    %c0_6 = arith.constant 0 : index
    %20 = vector.load %arg5[%19, %c0_6] : memref<64x96xf32, #tpu.memory_space<vmem>>, vector<1x96xf32>
    %c7 = arith.constant 7 : index
    %21 = memref.load %arg1[%c7] : memref<8xi32, #tpu.memory_space<smem>>
    %22 = arith.index_cast %21 : i32 to index
    %c0_7 = arith.constant 0 : index
    %23 = vector.load %arg5[%22, %c0_7] : memref<64x96xf32, #tpu.memory_space<vmem>>, vector<1x96xf32>
    %24 = tpu.concatenate %2, %5, %8, %11, %14, %17, %20, %23 in 0 : vector<1x96xf32>, vector<1x96xf32>, vector<1x96xf32>, vector<1x96xf32>, vector<1x96xf32>, vector<1x96xf32>, vector<1x96xf32>, vector<1x96xf32> -> vector<8x96xf32>
    %25 = vector.extract_strided_slice %24 {offsets = [0, 0], sizes = [8, 32], strides = [1, 1]} : vector<8x96xf32> to vector<8x32xf32>
    %26 = vector.extract_strided_slice %24 {offsets = [0, 32], sizes = [8, 32], strides = [1, 1]} : vector<8x96xf32> to vector<8x32xf32>
    %27 = vector.extract_strided_slice %24 {offsets = [0, 64], sizes = [8, 32], strides = [1, 1]} : vector<8x96xf32> to vector<8x32xf32>
    %c0_8 = arith.constant 0 : index
    %c0_9 = arith.constant 0 : index
    %28 = vector.load %arg2[%c0_8, %c0_9] : memref<8x32xf32, #tpu.memory_space<vmem>>, vector<8x32xf32>
    %29 = arith.truncf %28 : vector<8x32xf32> to vector<8x32xbf16>
    %c0_10 = arith.constant 0 : index
    %c0_11 = arith.constant 0 : index
    %30 = vector.load %arg3[%c0_10, %c0_11] : memref<32x64xbf16, #tpu.memory_space<vmem>>, vector<32x64xbf16>
    %cst = arith.constant dense<0.000000e+00> : vector<8x64xf32>
    %31 = tpu.matmul %29, %30, %cst {dimension_numbers = #tpu.dot_dimension_numbers<[1], [0], [0], [1], [0, 0, 1, 1], [], []>} : vector<8x32xbf16>, vector<32x64xbf16>, vector<8x64xf32> -> vector<8x64xf32>
    %32 = vector.extract_strided_slice %31 {offsets = [0, 0], sizes = [8, 32], strides = [1, 1]} : vector<8x64xf32> to vector<8x32xf32>
    %33 = vector.extract_strided_slice %31 {offsets = [0, 32], sizes = [8, 16], strides = [1, 1]} : vector<8x64xf32> to vector<8x16xf32>
    %34 = vector.extract_strided_slice %31 {offsets = [0, 48], sizes = [8, 16], strides = [1, 1]} : vector<8x64xf32> to vector<8x16xf32>
    %35 = vector.extract_strided_slice %32 {offsets = [0, 4], sizes = [8, 28], strides = [1, 1]} : vector<8x32xf32> to vector<8x28xf32>
    %36 = vector.extract_strided_slice %32 {offsets = [0, 0], sizes = [8, 4], strides = [1, 1]} : vector<8x32xf32> to vector<8x4xf32>
    %37 = tpu.concatenate %35, %36 in 1 : vector<8x28xf32>, vector<8x4xf32> -> vector<8x32xf32>
    %38 = vector.extract_strided_slice %32 {offsets = [0, 28], sizes = [8, 4], strides = [1, 1]} : vector<8x32xf32> to vector<8x4xf32>
    %39 = vector.extract_strided_slice %32 {offsets = [0, 0], sizes = [8, 28], strides = [1, 1]} : vector<8x32xf32> to vector<8x28xf32>
    %40 = tpu.concatenate %38, %39 in 1 : vector<8x4xf32>, vector<8x28xf32> -> vector<8x32xf32>
    %41 = arith.mulf %32, %25 : vector<8x32xf32>
    %42 = arith.mulf %37, %26 : vector<8x32xf32>
    %43 = arith.addf %41, %42 : vector<8x32xf32>
    %44 = arith.mulf %40, %27 : vector<8x32xf32>
    %45 = arith.addf %43, %44 : vector<8x32xf32>
    %cst_12 = arith.constant 0.353553385 : f32
    %46 = vector.broadcast %cst_12 : f32 to vector<8x32xf32>
    %47 = arith.mulf %45, %46 : vector<8x32xf32>
    %48 = vector.extract_strided_slice %25 {offsets = [0, 0], sizes = [8, 16], strides = [1, 1]} : vector<8x32xf32> to vector<8x16xf32>
    %49 = vector.extract_strided_slice %26 {offsets = [0, 0], sizes = [8, 16], strides = [1, 1]} : vector<8x32xf32> to vector<8x16xf32>
    %50 = vector.extract_strided_slice %27 {offsets = [0, 0], sizes = [8, 16], strides = [1, 1]} : vector<8x32xf32> to vector<8x16xf32>
    %51 = vector.extract_strided_slice %33 {offsets = [0, 4], sizes = [8, 12], strides = [1, 1]} : vector<8x16xf32> to vector<8x12xf32>
    %52 = vector.extract_strided_slice %33 {offsets = [0, 0], sizes = [8, 4], strides = [1, 1]} : vector<8x16xf32> to vector<8x4xf32>
    %53 = tpu.concatenate %51, %52 in 1 : vector<8x12xf32>, vector<8x4xf32> -> vector<8x16xf32>
    %54 = vector.extract_strided_slice %33 {offsets = [0, 12], sizes = [8, 4], strides = [1, 1]} : vector<8x16xf32> to vector<8x4xf32>
    %55 = vector.extract_strided_slice %33 {offsets = [0, 0], sizes = [8, 12], strides = [1, 1]} : vector<8x16xf32> to vector<8x12xf32>
    %56 = tpu.concatenate %54, %55 in 1 : vector<8x4xf32>, vector<8x12xf32> -> vector<8x16xf32>
    %57 = arith.mulf %33, %48 : vector<8x16xf32>
    %58 = arith.mulf %53, %49 : vector<8x16xf32>
    %59 = arith.addf %57, %58 : vector<8x16xf32>
    %60 = arith.mulf %56, %50 : vector<8x16xf32>
    %61 = arith.addf %59, %60 : vector<8x16xf32>
    %62 = arith.truncf %47 : vector<8x32xf32> to vector<8x32xbf16>
    %63 = arith.truncf %61 : vector<8x16xf32> to vector<8x16xbf16>
    %64 = arith.truncf %34 : vector<8x16xf32> to vector<8x16xbf16>
    %65 = tpu.iota {dimensions = array<i32: 0>} : vector<8x8xi32>
    %66 = tpu.iota {dimensions = array<i32: 1>} : vector<8x8xi32>
    %67 = arith.cmpi sle, %66, %65 : vector<8x8xi32>
    %cst_13 = arith.constant 0.000000e+00 : f32
    %cst_14 = arith.constant -1.000000e+30 : f32
    %68 = vector.broadcast %cst_13 : f32 to vector<8x8xf32>
    %69 = vector.broadcast %cst_14 : f32 to vector<8x8xf32>
    %70 = arith.select %67, %68, %69 : vector<8x8xi1>, vector<8x8xf32>
    %71 = tpu.concatenate %70, %70 in 0 : vector<8x8xf32>, vector<8x8xf32> -> vector<16x8xf32>
    %72 = vector.extract_strided_slice %62 {offsets = [0, 0], sizes = [8, 8], strides = [1, 1]} : vector<8x32xbf16> to vector<8x8xbf16>
    %73 = vector.extract_strided_slice %62 {offsets = [0, 8], sizes = [8, 8], strides = [1, 1]} : vector<8x32xbf16> to vector<8x8xbf16>
    %74 = tpu.concatenate %72, %73 in 0 : vector<8x8xbf16>, vector<8x8xbf16> -> vector<16x8xbf16>
    %75 = vector.extract_strided_slice %63 {offsets = [0, 0], sizes = [8, 8], strides = [1, 1]} : vector<8x16xbf16> to vector<8x8xbf16>
    %76 = vector.extract_strided_slice %64 {offsets = [0, 0], sizes = [8, 8], strides = [1, 1]} : vector<8x16xbf16> to vector<8x8xbf16>
    %cst_15 = arith.constant dense<0.000000e+00> : vector<16x8xf32>
    %77 = tpu.matmul %74, %75, %cst_15 {dimension_numbers = #tpu.dot_dimension_numbers<[1], [1], [0], [0], [0, 0, 1, 0], [], []>} : vector<16x8xbf16>, vector<8x8xbf16>, vector<16x8xf32> -> vector<16x8xf32>
    %78 = arith.addf %77, %71 : vector<16x8xf32>
    %cst_16 = arith.constant dense<0xFF800000> : vector<16xf32>
    %79 = vector.multi_reduction <maximumf>, %78, %cst_16 [1] : vector<16x8xf32> to vector<16xf32>
    %80 = vector.shape_cast %79 : vector<16xf32> to vector<16x1xf32>
    %81 = vector.broadcast %80 : vector<16x1xf32> to vector<16x8xf32>
    %82 = arith.subf %78, %81 : vector<16x8xf32>
    %83 = math.exp %82 : vector<16x8xf32>
    %cst_17 = arith.constant dense<0.000000e+00> : vector<16xf32>
    %84 = vector.multi_reduction <add>, %83, %cst_17 [1] : vector<16x8xf32> to vector<16xf32>
    %85 = vector.shape_cast %84 : vector<16xf32> to vector<16x1xf32>
    %86 = tpu.reciprocal %85 {approx = true} : vector<16x1xf32> -> vector<16x1xf32>
    %87 = vector.broadcast %86 : vector<16x1xf32> to vector<16x8xf32>
    %88 = arith.mulf %83, %87 : vector<16x8xf32>
    %89 = arith.truncf %88 : vector<16x8xf32> to vector<16x8xbf16>
    %cst_18 = arith.constant dense<0.000000e+00> : vector<16x8xf32>
    %90 = tpu.matmul %89, %76, %cst_18 {dimension_numbers = #tpu.dot_dimension_numbers<[1], [0], [0], [1], [0, 0, 1, 1], [], []>} : vector<16x8xbf16>, vector<8x8xbf16>, vector<16x8xf32> -> vector<16x8xf32>
    %91 = vector.extract_strided_slice %90 {offsets = [0, 0], sizes = [8, 8], strides = [1, 1]} : vector<16x8xf32> to vector<8x8xf32>
    %92 = vector.extract_strided_slice %90 {offsets = [8, 0], sizes = [8, 8], strides = [1, 1]} : vector<16x8xf32> to vector<8x8xf32>
    %93 = vector.extract_strided_slice %62 {offsets = [0, 16], sizes = [8, 8], strides = [1, 1]} : vector<8x32xbf16> to vector<8x8xbf16>
    %94 = vector.extract_strided_slice %62 {offsets = [0, 24], sizes = [8, 8], strides = [1, 1]} : vector<8x32xbf16> to vector<8x8xbf16>
    %95 = tpu.concatenate %93, %94 in 0 : vector<8x8xbf16>, vector<8x8xbf16> -> vector<16x8xbf16>
    %96 = vector.extract_strided_slice %63 {offsets = [0, 8], sizes = [8, 8], strides = [1, 1]} : vector<8x16xbf16> to vector<8x8xbf16>
    %97 = vector.extract_strided_slice %64 {offsets = [0, 8], sizes = [8, 8], strides = [1, 1]} : vector<8x16xbf16> to vector<8x8xbf16>
    %cst_19 = arith.constant dense<0.000000e+00> : vector<16x8xf32>
    %98 = tpu.matmul %95, %96, %cst_19 {dimension_numbers = #tpu.dot_dimension_numbers<[1], [1], [0], [0], [0, 0, 1, 0], [], []>} : vector<16x8xbf16>, vector<8x8xbf16>, vector<16x8xf32> -> vector<16x8xf32>
    %99 = arith.addf %98, %71 : vector<16x8xf32>
    %cst_20 = arith.constant dense<0xFF800000> : vector<16xf32>
    %100 = vector.multi_reduction <maximumf>, %99, %cst_20 [1] : vector<16x8xf32> to vector<16xf32>
    %101 = vector.shape_cast %100 : vector<16xf32> to vector<16x1xf32>
    %102 = vector.broadcast %101 : vector<16x1xf32> to vector<16x8xf32>
    %103 = arith.subf %99, %102 : vector<16x8xf32>
    %104 = math.exp %103 : vector<16x8xf32>
    %cst_21 = arith.constant dense<0.000000e+00> : vector<16xf32>
    %105 = vector.multi_reduction <add>, %104, %cst_21 [1] : vector<16x8xf32> to vector<16xf32>
    %106 = vector.shape_cast %105 : vector<16xf32> to vector<16x1xf32>
    %107 = tpu.reciprocal %106 {approx = true} : vector<16x1xf32> -> vector<16x1xf32>
    %108 = vector.broadcast %107 : vector<16x1xf32> to vector<16x8xf32>
    %109 = arith.mulf %104, %108 : vector<16x8xf32>
    %110 = arith.truncf %109 : vector<16x8xf32> to vector<16x8xbf16>
    %cst_22 = arith.constant dense<0.000000e+00> : vector<16x8xf32>
    %111 = tpu.matmul %110, %97, %cst_22 {dimension_numbers = #tpu.dot_dimension_numbers<[1], [0], [0], [1], [0, 0, 1, 1], [], []>} : vector<16x8xbf16>, vector<8x8xbf16>, vector<16x8xf32> -> vector<16x8xf32>
    %112 = vector.extract_strided_slice %111 {offsets = [0, 0], sizes = [8, 8], strides = [1, 1]} : vector<16x8xf32> to vector<8x8xf32>
    %113 = vector.extract_strided_slice %111 {offsets = [8, 0], sizes = [8, 8], strides = [1, 1]} : vector<16x8xf32> to vector<8x8xf32>
    %114 = tpu.concatenate %91, %92, %112, %113 in 1 : vector<8x8xf32>, vector<8x8xf32>, vector<8x8xf32>, vector<8x8xf32> -> vector<8x32xf32>
    %115 = arith.truncf %114 : vector<8x32xf32> to vector<8x32xbf16>
    %c0_23 = arith.constant 0 : index
    %c0_24 = arith.constant 0 : index
    %116 = vector.load %arg4[%c0_23, %c0_24] : memref<32x128xbf16, #tpu.memory_space<vmem>>, vector<32x128xbf16>
    %cst_25 = arith.constant dense<0.000000e+00> : vector<8x128xf32>
    %117 = tpu.matmul %115, %116, %cst_25 {dimension_numbers = #tpu.dot_dimension_numbers<[1], [0], [0], [1], [0, 0, 1, 1], [], []>} : vector<8x32xbf16>, vector<32x128xbf16>, vector<8x128xf32> -> vector<8x128xf32>
    %c0_26 = arith.constant 0 : index
    %c0_27 = arith.constant 0 : index
    %118 = vector.load %arg6[%c0_26, %c0_27] : memref<8x128xf32, #tpu.memory_space<vmem>>, vector<8x128xf32>
    tpu.vector_store %arg6[%c0_26, %c0_27], %117 {strides = array<i32>} : memref<8x128xf32, #tpu.memory_space<vmem>>, vector<8x128xf32>,
    return
  }
  func.func @transform_0(%arg0: i32, %arg1: memref<8xi32, #tpu.memory_space<smem>>) -> (i32, i32) {
    %c0_i32 = arith.constant 0 : i32
    %c0_i32_0 = arith.constant 0 : i32
    %c0_i32_1 = arith.constant 0 : i32
    return %c0_i32, %c0_i32_0 : i32, i32
  }
  func.func @transform_1(%arg0: i32, %arg1: memref<8xi32, #tpu.memory_space<smem>>) -> (i32, i32) {
    %c0_i32 = arith.constant 0 : i32
    %c0_i32_0 = arith.constant 0 : i32
    %c0_i32_1 = arith.constant 0 : i32
    return %c0_i32, %c0_i32_0 : i32, i32
  }
  func.func @transform_2(%arg0: i32, %arg1: memref<8xi32, #tpu.memory_space<smem>>) -> (i32, i32) {
    %c0_i32 = arith.constant 0 : i32
    %c0_i32_0 = arith.constant 0 : i32
    %c0_i32_1 = arith.constant 0 : i32
    return %c0_i32, %c0_i32_0 : i32, i32
  }
  func.func @transform_3(%arg0: i32, %arg1: memref<8xi32, #tpu.memory_space<smem>>) -> (i32, i32) {
    %c0_i32 = arith.constant 0 : i32
    %c0_i32_0 = arith.constant 0 : i32
    %c0_i32_1 = arith.constant 0 : i32
    return %c0_i32, %c0_i32_0 : i32, i32
  }
  func.func @transform_4(%arg0: i32, %arg1: memref<8xi32, #tpu.memory_space<smem>>) -> (i32, i32) {
    %c0_i32 = arith.constant 0 : i32
    %c0_i32_0 = arith.constant 0 : i32
    %c0_i32_1 = arith.constant 0 : i32
    return %c0_i32, %c0_i32_0 : i32, i32
  }
}

</mosaic_0001>

<llo_original>
// kernel: mixtral_attention.1
$region0: #{mixtral_attention.1}
  #allocation0 [shape = 'u32[]', space=smem, size = 0x4, offset = 0x4, fixed_abs, tag = 'smem constant byte address 0x4 - core index']
  #allocation1 [shape = 'u32[144,128]{1,0:T(1,128)}', space=vmem, size = 0x12000, scoped, tag = 'internal scratch']
  #allocation2 [shape = 's32[1]{0}', space=sflag, size = 0x4, scoped, tag = 'scoped memory for mixtral_attention.1']
  #allocation3 [shape = 'u8[512]{0}', space=smem, size = 0x200, scoped, tag = 'prefetched SMEM operand 0']
  %s0 = inlined_call_operand.hbm [shape: s32[8], index: 0, kind: input, shape index: {}]
  %s1 = inlined_call_operand.hbm [shape: f32[8,32], index: 1, kind: input, shape index: {}]
  %s2 = inlined_call_operand.hbm [shape: bf16[32,64], index: 2, kind: input, shape index: {}]
  %s3 = inlined_call_operand.hbm [shape: bf16[32,128], index: 3, kind: input, shape index: {}]
  %s4 = inlined_call_operand.hbm [shape: f32[64,96], index: 4, kind: input, shape index: {}]
  %s5 = inlined_call_operand.hbm [shape: f32[8,128], index: 5, kind: output, shape index: {}]
  %s6 = sld [smem:[#allocation0]]
  $region42: #{mixtral_attention.1} parent=0
    _
  %s8 = ssub.s32 1, %s6
  %s9 = scalar_select 0, %s8, %s6
  %11 = dma.hbm_to_smem %s0, 16, [#allocation3], [#allocation2]
  %12 = dma.done [#allocation2], 16
  %13 = sfence
  $region1: #{mixtral_attention.1} parent=0
    #allocation4 [shape = 'u8[4096]{0}', space=vmem, size = 0x1000, scoped, tag = 'input window, operand 1, single buffered']
    #allocation5 [shape = 's32[1]{0}', space=sflag, size = 0x4, scoped, tag = 'scoped memory for mixtral_attention.1']
    #allocation6 [shape = 's32[1]{0}', space=sflag, size = 0x4, scoped, tag = 'scoped memory for mixtral_attention.1']
    #allocation7 [shape = 'u8[8192]{0}', space=vmem, size = 0x2000, scoped, tag = 'input window, operand 2, single buffered']
    #allocation8 [shape = 's32[1]{0}', space=sflag, size = 0x4, scoped, tag = 'scoped memory for mixtral_attention.1']
    #allocation9 [shape = 'u8[8192]{0}', space=vmem, size = 0x2000, scoped, tag = 'input window, operand 3, single buffered']
    #allocation10 [shape = 'u8[32768]{0}', space=vmem, size = 0x8000, scoped, tag = 'input window, operand 4, single buffered']
    #allocation11 [shape = 's32[1]{0}', space=sflag, size = 0x4, scoped, tag = 'scoped memory for mixtral_attention.1']
    #allocation12 [shape = 'u8[4096]{0}', space=vmem, size = 0x1000, scoped, tag = 'output window, operand 0, single buffered']
    %14 = vsyncpa [#allocation5], 0
    %15 = vsyncpa [#allocation8], 0
    %16 = vsyncpa [#allocation11], 0
    %17 = vsyncpa [#allocation6], 0
    // Predicated region
    $region2: #{mixtral_attention.1} parent=1 // pred_check
      _
    $region3: #{mixtral_attention.1} parent=1 // pred_check_branch
      %19 = sbr.rel (0) target = $region5
    $region4: #{mixtral_attention.1} parent=1 // pred_region
      %s21 = ssub.s32 128, 128
      %22 = vsyncadd [#allocation5], %s21
      %s24 = sshll.u32 [#allocation4], 4
      %s25 = int_to_ptr.vmem [resolvable:$true] %s24
      %27 = dma.hbm_to_vmem [thread:$0]  %s1, 128, %s25, [#allocation5]
    $region5: #{mixtral_attention.1} parent=1 // pred_fallthru
      _
    // Predicated region
    $region6: #{mixtral_attention.1} parent=1 // pred_check
      _
    $region7: #{mixtral_attention.1} parent=1 // pred_check_branch
      %29 = sbr.rel (0) target = $region9
    $region8: #{mixtral_attention.1} parent=1 // pred_region
      %s31 = ssub.s32 256, 256
      %32 = vsyncadd [#allocation8], %s31
      %s33 = sshll.u32 [#allocation7], 4
      %s34 = int_to_ptr.vmem [resolvable:$true] %s33
      %39 = dma.hbm_to_vmem [thread:$0]  %s2, 256, %s34, [#allocation8], 64, 64, 4
    $region9: #{mixtral_attention.1} parent=1 // pred_fallthru
      _
    // Predicated region
    $region10: #{mixtral_attention.1} parent=1 // pred_check
      _
    $region11: #{mixtral_attention.1} parent=1 // pred_check_branch
      %41 = sbr.rel (0) target = $region13
    $region12: #{mixtral_attention.1} parent=1 // pred_region
      %s43 = ssub.s32 256, 256
      %44 = vsyncadd [#allocation8], %s43
      %s45 = sshll.u32 [#allocation9], 4
      %s46 = int_to_ptr.vmem [resolvable:$true] %s45
      %51 = dma.hbm_to_vmem [thread:$0]  %s3, 256, %s46, [#allocation8], 64, 64, 4
    $region13: #{mixtral_attention.1} parent=1 // pred_fallthru
      _
    // Predicated region
    $region14: #{mixtral_attention.1} parent=1 // pred_check
      _
    $region15: #{mixtral_attention.1} parent=1 // pred_check_branch
      %53 = sbr.rel (0) target = $region17
    $region16: #{mixtral_attention.1} parent=1 // pred_region
      %s55 = ssub.s32 1024, 1024
      %56 = vsyncadd [#allocation11], %s55
      %s57 = sshll.u32 [#allocation10], 4
      %s58 = int_to_ptr.vmem [resolvable:$true] %s57
      %63 = dma.hbm_to_vmem [thread:$0]  %s4, 1024, %s58, [#allocation11], 128, 128, 8
    $region17: #{mixtral_attention.1} parent=1 // pred_fallthru
      _
    // Predicated region
    $region18: #{mixtral_attention.1} parent=1 // pred_check
      _
    $region19: #{mixtral_attention.1} parent=1 // pred_check_branch
      %65 = sbr.rel (0) target = $region21
    $region20: #{mixtral_attention.1} parent=1 // pred_region
      %66 = dma.done [#allocation5], 128
    $region21: #{mixtral_attention.1} parent=1 // pred_fallthru
      _
    // Predicated region
    $region22: #{mixtral_attention.1} parent=1 // pred_check
      _
    $region23: #{mixtral_attention.1} parent=1 // pred_check_branch
      %68 = sbr.rel (0) target = $region25
    $region24: #{mixtral_attention.1} parent=1 // pred_region
      %69 = dma.done [#allocation8], 256
    $region25: #{mixtral_attention.1} parent=1 // pred_fallthru
      _
    // Predicated region
    $region26: #{mixtral_attention.1} parent=1 // pred_check
      _
    $region27: #{mixtral_attention.1} parent=1 // pred_check_branch
      %71 = sbr.rel (0) target = $region29
    $region28: #{mixtral_attention.1} parent=1 // pred_region
      %72 = dma.done [#allocation8], 256
    $region29: #{mixtral_attention.1} parent=1 // pred_fallthru
      _
    // Predicated region
    $region30: #{mixtral_attention.1} parent=1 // pred_check
      _
    $region31: #{mixtral_attention.1} parent=1 // pred_check_branch
      %74 = sbr.rel (0) target = $region33
    $region32: #{mixtral_attention.1} parent=1 // pred_region
      %75 = dma.done [#allocation11], 1024
    $region33: #{mixtral_attention.1} parent=1 // pred_fallthru
      _
    %s77 = sld [smem:[#allocation3]]
    %s78 = scalar_lea.vmem [#allocation10], %s77
    %v79 = vld [vmem:[%s78] sm:$0x1]
    %s80 = sld [smem:[#allocation3 + $0x1]]
    %s81 = scalar_lea.vmem [#allocation10], %s80
    %v82 = vld [vmem:[%s81] sm:$0x1]
    %s83 = sld [smem:[#allocation3 + $0x2]]
    %s84 = scalar_lea.vmem [#allocation10], %s83
    %v85 = vld [vmem:[%s84] sm:$0x1]
    %s86 = sld [smem:[#allocation3 + $0x3]]
    %s87 = scalar_lea.vmem [#allocation10], %s86
    %v88 = vld [vmem:[%s87] sm:$0x1]
    %s89 = sld [smem:[#allocation3 + $0x4]]
    %s90 = scalar_lea.vmem [#allocation10], %s89
    %v91 = vld [vmem:[%s90] sm:$0x1]
    %s92 = sld [smem:[#allocation3 + $0x5]]
    %s93 = scalar_lea.vmem [#allocation10], %s92
    %v94 = vld [vmem:[%s93] sm:$0x1]
    %s95 = sld [smem:[#allocation3 + $0x6]]
    %s96 = scalar_lea.vmem [#allocation10], %s95
    %v97 = vld [vmem:[%s96] sm:$0x1]
    %s98 = sld [smem:[#allocation3 + $0x7]]
    %s99 = scalar_lea.vmem [#allocation10], %s98
    %v100 = vld [vmem:[%s99] sm:$0x1]
    %v102 = vrot.slane %v82, 7
    %v105 = vrot.slane %v85, 6
    %v108 = vrot.slane %v88, 5
    %v111 = vrot.slane %v91, 4
    %v114 = vrot.slane %v94, 3
    %v117 = vrot.slane %v97, 2
    %v120 = vrot.slane %v100, 1
    %vm122 = vcmask 1040384
    %v123 = vsel %vm122, %v79, %v102
    %vm124 = vcmask 1041408
    %v125 = vsel %vm124, %v123, %v105
    %vm126 = vcmask 1042432
    %v127 = vsel %vm126, %v125, %v108
    %vm128 = vcmask 1043456
    %v129 = vsel %vm128, %v127, %v111
    %vm130 = vcmask 1044480
    %v131 = vsel %vm130, %v129, %v114
    %vm132 = vcmask 1045504
    %v133 = vsel %vm132, %v131, %v117
    %vm134 = vcmask 1046528
    %v135 = vsel %vm134, %v133, %v120
    %v136 = vld [vmem:[#allocation4] sm:$0xff]
    %v137 = vpack.c.bf16 %v136, %v136
    %v138 = vld [vmem:[#allocation7] sm:$0xf]
    %v139 = vld [vmem:[#allocation7 + $0x4] sm:$0xf]
    %v140 = vld [vmem:[#allocation7 + $0x8] sm:$0xf]
    %v141 = vld [vmem:[#allocation7 + $0xc] sm:$0xf]
    %v146 = vunpack.c.l.b16 %v138
    %v147 = vunpack.c.l.b16 %v139
    %v148 = vunpack.c.l.b16 %v140
    %v149 = vunpack.c.l.b16 %v141
    %v150 = vpack.c.b16 %v147, %v146
    %v151 = vpack.c.b16 %v149, %v148
    %vm154 = vcmask 261120
    %v156 = vsel %vm154, %v137, 0
    %158 = vmatprep.subr.bf16.mxu0 0
    %159 = vmatpush1.bf16.msra.mxu0 0
    %160 = vmatprep.subr.bf16.mxu0 0
    %161 = vmatpush1.bf16.msra.mxu0 0
    %162 = vmatprep.subr.bf16.mxu0 0
    %163 = vmatpush1.bf16.msra.mxu0 0
    %164 = vmatprep.subr.bf16.mxu0 0
    %165 = vmatpush1.bf16.msra.mxu0 0
    %166 = vmatprep.subr.bf16.mxu0 0
    %167 = vmatpush1.bf16.msra.mxu0 0
    %168 = vmatprep.subr.bf16.mxu0 0
    %169 = vmatpush1.bf16.msra.mxu0 0
    %170 = vmatprep.subr.bf16.mxu0 0
    %171 = vmatpush1.bf16.msra.mxu0 %v151
    %172 = vmatprep.subr.bf16.mxu0 0
    %173 = vmatpush1.bf16.msra.mxu0 %v150
    %174 = vmatprep.subr.bf16.mxu0 0
    %175 = vmatpush2.bf16.msra.mxu0 0
    %176 = vmatprep.subr.bf16.mxu0 0
    %177 = vmatpush2.bf16.msra.mxu0 0
    %178 = vmatprep.subr.bf16.mxu0 0
    %179 = vmatpush2.bf16.msra.mxu0 0
    %180 = vmatprep.subr.bf16.mxu0 0
    %181 = vmatpush2.bf16.msra.mxu0 0
    %182 = vmatprep.subr.bf16.mxu0 0
    %183 = vmatpush2.bf16.msra.mxu0 0
    %184 = vmatprep.subr.bf16.mxu0 0
    %185 = vmatpush2.bf16.msra.mxu0 0
    %186 = vmatprep.subr.bf16.mxu0 0
    %187 = vmatpush2.bf16.msra.mxu0 0
    %188 = vmatprep.subr.bf16.mxu0 0
    %189 = vmatpush2.bf16.msra.mxu0 0
    %190 = vmatprep.mubr.bf16.mxu0 0
    %191 = vmatmul.mubr.bf16.gmra.mxu0 %v156
    %v192 = vpop.f32.mrf.mxu0
    %v193 = vadd.f32 0.0, %v192
    %v194 = vpop.f32.mrf.mxu0
    %v195 = vpop.f32.mrf.mxu0
    %v196 = vpop.f32.mrf.mxu0
    %197 = vdwg.mxu0
    %199 = vrot.lane.b32.xlu0 %v193, 124
    %v200 = vpop.permute.xlu0 %199
    %202 = vrot.lane.b32.xlu0 %v193, 28
    %v203 = vpop.permute.xlu0 %202
    %vm205 = vcmask 228352
    %v206 = vsel %vm205, %v200, %v203
    %207 = vrot.lane.b32.xlu0 %v193, 100
    %v208 = vpop.permute.xlu0 %207
    %210 = vrot.lane.b32.xlu0 %v193, 4
    %v211 = vpop.permute.xlu0 %210
    %vm213 = vcmask 31744
    %v214 = vsel %vm213, %v208, %v211
    %v215 = vmul.f32 %v193, %v135
    %217 = vrot.lane.b32.xlu0 %v135, 96
    %v218 = vpop.permute.xlu0 %217
    %v220 = vmul.f32 %v206, %v218
    %v221 = vadd.f32 %v215, %v220
    %222 = vrot.lane.b32.xlu0 %v135, 64
    %v223 = vpop.permute.xlu0 %222
    %v225 = vmul.f32 %v214, %v223
    %v226 = vadd.f32 %v221, %v225
    %v227 = vmul.f32 %v226, 0.35355338
    %228 = vrot.lane.b32.xlu0 %v193, 92
    %v229 = vpop.permute.xlu0 %228
    %231 = vrot.lane.b32.xlu0 %v193, 108
    %v232 = vpop.permute.xlu0 %231
    %vm234 = vcmask 97280
    %v235 = vsel %vm234, %v229, %v232
    %236 = vrot.lane.b32.xlu0 %v193, 84
    %v237 = vpop.permute.xlu0 %236
    %v239 = vsel %vm213, %v237, %v208
    %240 = vrot.lane.b32.xlu0 %v135, 32
    %v241 = vpop.permute.xlu0 %240
    %v243 = vmul.f32 %v193, %v241
    %v244 = vmul.f32 %v235, %v218
    %246 = vrot.lane.b32.xlu0 %v244, 32
    %v247 = vpop.permute.xlu0 %246
    %v249 = vadd.f32 %v243, %v247
    %v250 = vmul.f32 %v239, %v223
    %252 = vrot.lane.b32.xlu0 %v250, 32
    %v253 = vpop.permute.xlu0 %252
    %v255 = vadd.f32 %v249, %v253
    %v256 = vpack.c.bf16 %v227, %v227
    %v257 = vpack.c.bf16 %v255, %v255
    %v258 = vpack.c.bf16 %v193, %v193
    %v259 = vlaneseq
    %v260 = vshrl.u32 %v259, 7
    %v261 = vlaneseq
    %v262 = vand.u32 %v261, 127
    %vm263 = vcmp.le.s32.totalorder %v262, %v260
    %v264 = vsel %vm263, 0.0, -1e+30
    %v266 = vrot.slane %v256, 4
    %267 = vrot.lane.b32.xlu0 %v266, 120
    %v268 = vpop.permute.xlu0 %267
    %v271 = vsel %vm128, %v256, %v268
    %273 = vrot.lane.b32.xlu0 %v257, 96
    %v274 = vpop.permute.xlu0 %273
    %vm275 = vcmask 64512
    %v276 = vsel %vm275, %v271, 0
    %v279 = vsel %vm275, %v274, 0
    %281 = vmatprep.subr.bf16.mxu0 0
    %282 = vmatpush1.bf16.xpose.msra.mxu0 0
    %283 = vmatprep.subr.bf16.mxu0 0
    %284 = vmatpush1.bf16.xpose.msra.mxu0 0
    %285 = vmatprep.subr.bf16.mxu0 0
    %286 = vmatpush1.bf16.xpose.msra.mxu0 0
    %287 = vmatprep.subr.bf16.mxu0 0
    %288 = vmatpush1.bf16.xpose.msra.mxu0 0
    %289 = vmatprep.subr.bf16.mxu0 0
    %290 = vmatpush1.bf16.xpose.msra.mxu0 0
    %291 = vmatprep.subr.bf16.mxu0 0
    %292 = vmatpush1.bf16.xpose.msra.mxu0 0
    %293 = vmatprep.subr.bf16.mxu0 0
    %294 = vmatpush1.bf16.xpose.msra.mxu0 0
    %295 = vmatprep.subr.bf16.mxu0 0
    %296 = vmatpush1.bf16.xpose.msra.mxu0 %v279
    %297 = vmatprep.subr.bf16.mxu0 0
    %298 = vmatpush2.bf16.xpose.msra.mxu0 0
    %299 = vmatprep.subr.bf16.mxu0 0
    %300 = vmatpush2.bf16.xpose.msra.mxu0 0
    %301 = vmatprep.subr.bf16.mxu0 0
    %302 = vmatpush2.bf16.xpose.msra.mxu0 0
    %303 = vmatprep.subr.bf16.mxu0 0
    %304 = vmatpush2.bf16.xpose.msra.mxu0 0
    %305 = vmatprep.subr.bf16.mxu0 0
    %306 = vmatpush2.bf16.xpose.msra.mxu0 0
    %307 = vmatprep.subr.bf16.mxu0 0
    %308 = vmatpush2.bf16.xpose.msra.mxu0 0
    %309 = vmatprep.subr.bf16.mxu0 0
    %310 = vmatpush2.bf16.xpose.msra.mxu0 0
    %311 = vmatprep.subr.bf16.mxu0 0
    %312 = vmatpush2.bf16.xpose.msra.mxu0 0
    %313 = vmatprep.mubr.bf16.mxu0 0
    %314 = vmatmul.mubr.bf16.gmra.mxu0 %v276
    %v315 = vpop.f32.mrf.mxu0
    %v316 = vadd.f32 %v264, %v315
    %v317 = vpop.f32.mrf.mxu0
    %v318 = vpop.f32.mrf.mxu0
    %v319 = vadd.f32 %v264, %v318
    %v320 = vpop.f32.mrf.mxu0
    %321 = vdwg.mxu0
    %v322 = vsel %vm275, %v316, -inf
    %323 = vmax.xlane.f32.xlu0 %v322
    %v324 = vpop.xlane.xlu0 %323
    %v325 = vsel %vm275, %v319, -inf
    %326 = vmax.xlane.f32.xlu0 %v325
    %v327 = vpop.xlane.xlu0 %326
    %v328 = vsub.f32 %v316, %v324
    %v329 = vsub.f32 %v319, %v327
    %v330 = vmul.f32 %v328, 1.442695
    %v331 = vpow.pop %v330
    %v332 = vmul.f32 %v329, 1.442695
    %v333 = vpow.pop %v332
    %v334 = vsel %vm275, %v331, 0.0
    %335 = vadd.xlane.f32.xlu0 %v334
    %v336 = vpop.xlane.xlu0 %335
    %v337 = vsel %vm275, %v333, 0.0
    %338 = vadd.xlane.f32.xlu0 %v337
    %v339 = vpop.xlane.xlu0 %338
    %v340 = vrcp.pop %v336
    %v341 = vrcp.pop %v339
    %v342 = vmul.f32 %v331, %v340
    %v343 = vmul.f32 %v333, %v341
    %v344 = vpack.c.bf16 %v343, %v342
    %346 = vrot.lane.b32.xlu0 %v258, 80
    %v347 = vpop.permute.xlu0 %346
    %v349 = vsel %vm275, %v344, 0
    %v352 = vsel %vm128, %v347, 0
    %354 = vmatprep.subr.bf16.mxu0 0
    %355 = vmatpush1.bf16.msra.mxu0 0
    %356 = vmatprep.subr.bf16.mxu0 0
    %357 = vmatpush1.bf16.msra.mxu0 0
    %358 = vmatprep.subr.bf16.mxu0 0
    %359 = vmatpush1.bf16.msra.mxu0 0
    %360 = vmatprep.subr.bf16.mxu0 0
    %361 = vmatpush1.bf16.msra.mxu0 0
    %362 = vmatprep.subr.bf16.mxu0 0
    %363 = vmatpush1.bf16.msra.mxu0 0
    %364 = vmatprep.subr.bf16.mxu0 0
    %365 = vmatpush1.bf16.msra.mxu0 0
    %366 = vmatprep.subr.bf16.mxu0 0
    %367 = vmatpush1.bf16.msra.mxu0 0
    %368 = vmatprep.subr.bf16.mxu0 0
    %369 = vmatpush1.bf16.msra.mxu0 %v352
    %370 = vmatprep.subr.bf16.mxu0 0
    %371 = vmatpush2.bf16.msra.mxu0 0
    %372 = vmatprep.subr.bf16.mxu0 0
    %373 = vmatpush2.bf16.msra.mxu0 0
    %374 = vmatprep.subr.bf16.mxu0 0
    %375 = vmatpush2.bf16.msra.mxu0 0
    %376 = vmatprep.subr.bf16.mxu0 0
    %377 = vmatpush2.bf16.msra.mxu0 0
    %378 = vmatprep.subr.bf16.mxu0 0
    %379 = vmatpush2.bf16.msra.mxu0 0
    %380 = vmatprep.subr.bf16.mxu0 0
    %381 = vmatpush2.bf16.msra.mxu0 0
    %382 = vmatprep.subr.bf16.mxu0 0
    %383 = vmatpush2.bf16.msra.mxu0 0
    %384 = vmatprep.subr.bf16.mxu0 0
    %385 = vmatpush2.bf16.msra.mxu0 0
    %386 = vmatprep.mubr.bf16.mxu0 0
    %387 = vmatmul.mubr.bf16.gmra.mxu0 %v349
    %v388 = vpop.f32.mrf.mxu0
    %v389 = vadd.f32 0.0, %v388
    %v390 = vpop.f32.mrf.mxu0
    %v391 = vpop.f32.mrf.mxu0
    %v392 = vadd.f32 0.0, %v391
    %v393 = vpop.f32.mrf.mxu0
    %394 = vdwg.mxu0
    %396 = vrot.lane.b32.xlu0 %v271, 112
    %v397 = vpop.permute.xlu0 %396
    %398 = vrot.lane.b32.xlu0 %v257, 88
    %v399 = vpop.permute.xlu0 %398
    %v401 = vsel %vm275, %v397, 0
    %v404 = vsel %vm275, %v399, 0
    %406 = vmatprep.subr.bf16.mxu0 0
    %407 = vmatpush1.bf16.xpose.msra.mxu0 0
    %408 = vmatprep.subr.bf16.mxu0 0
    %409 = vmatpush1.bf16.xpose.msra.mxu0 0
    %410 = vmatprep.subr.bf16.mxu0 0
    %411 = vmatpush1.bf16.xpose.msra.mxu0 0
    %412 = vmatprep.subr.bf16.mxu0 0
    %413 = vmatpush1.bf16.xpose.msra.mxu0 0
    %414 = vmatprep.subr.bf16.mxu0 0
    %415 = vmatpush1.bf16.xpose.msra.mxu0 0
    %416 = vmatprep.subr.bf16.mxu0 0
    %417 = vmatpush1.bf16.xpose.msra.mxu0 0
    %418 = vmatprep.subr.bf16.mxu0 0
    %419 = vmatpush1.bf16.xpose.msra.mxu0 0
    %420 = vmatprep.subr.bf16.mxu0 0
    %421 = vmatpush1.bf16.xpose.msra.mxu0 %v404
    %422 = vmatprep.subr.bf16.mxu0 0
    %423 = vmatpush2.bf16.xpose.msra.mxu0 0
    %424 = vmatprep.subr.bf16.mxu0 0
    %425 = vmatpush2.bf16.xpose.msra.mxu0 0
    %426 = vmatprep.subr.bf16.mxu0 0
    %427 = vmatpush2.bf16.xpose.msra.mxu0 0
    %428 = vmatprep.subr.bf16.mxu0 0
    %429 = vmatpush2.bf16.xpose.msra.mxu0 0
    %430 = vmatprep.subr.bf16.mxu0 0
    %431 = vmatpush2.bf16.xpose.msra.mxu0 0
    %432 = vmatprep.subr.bf16.mxu0 0
    %433 = vmatpush2.bf16.xpose.msra.mxu0 0
    %434 = vmatprep.subr.bf16.mxu0 0
    %435 = vmatpush2.bf16.xpose.msra.mxu0 0
    %436 = vmatprep.subr.bf16.mxu0 0
    %437 = vmatpush2.bf16.xpose.msra.mxu0 0
    %438 = vmatprep.mubr.bf16.mxu0 0
    %439 = vmatmul.mubr.bf16.gmra.mxu0 %v401
    %v440 = vpop.f32.mrf.mxu0
    %v441 = vadd.f32 %v264, %v440
    %v442 = vpop.f32.mrf.mxu0
    %v443 = vpop.f32.mrf.mxu0
    %v444 = vadd.f32 %v264, %v443
    %v445 = vpop.f32.mrf.mxu0
    %446 = vdwg.mxu0
    %v447 = vsel %vm275, %v441, -inf
    %448 = vmax.xlane.f32.xlu0 %v447
    %v449 = vpop.xlane.xlu0 %448
    %v450 = vsel %vm275, %v444, -inf
    %451 = vmax.xlane.f32.xlu0 %v450
    %v452 = vpop.xlane.xlu0 %451
    %v453 = vsub.f32 %v441, %v449
    %v454 = vsub.f32 %v444, %v452
    %v455 = vmul.f32 %v453, 1.442695
    %v456 = vpow.pop %v455
    %v457 = vmul.f32 %v454, 1.442695
    %v458 = vpow.pop %v457
    %v459 = vsel %vm275, %v456, 0.0
    %460 = vadd.xlane.f32.xlu0 %v459
    %v461 = vpop.xlane.xlu0 %460
    %v462 = vsel %vm275, %v458, 0.0
    %463 = vadd.xlane.f32.xlu0 %v462
    %v464 = vpop.xlane.xlu0 %463
    %v465 = vrcp.pop %v461
    %v466 = vrcp.pop %v464
    %v467 = vmul.f32 %v456, %v465
    %v468 = vmul.f32 %v458, %v466
    %v469 = vpack.c.bf16 %v468, %v467
    %470 = vrot.lane.b32.xlu0 %v258, 72
    %v471 = vpop.permute.xlu0 %470
    %v473 = vsel %vm275, %v469, 0
    %v476 = vsel %vm128, %v471, 0
    %478 = vmatprep.subr.bf16.mxu0 0
    %479 = vmatpush1.bf16.msra.mxu0 0
    %480 = vmatprep.subr.bf16.mxu0 0
    %481 = vmatpush1.bf16.msra.mxu0 0
    %482 = vmatprep.subr.bf16.mxu0 0
    %483 = vmatpush1.bf16.msra.mxu0 0
    %484 = vmatprep.subr.bf16.mxu0 0
    %485 = vmatpush1.bf16.msra.mxu0 0
    %486 = vmatprep.subr.bf16.mxu0 0
    %487 = vmatpush1.bf16.msra.mxu0 0
    %488 = vmatprep.subr.bf16.mxu0 0
    %489 = vmatpush1.bf16.msra.mxu0 0
    %490 = vmatprep.subr.bf16.mxu0 0
    %491 = vmatpush1.bf16.msra.mxu0 0
    %492 = vmatprep.subr.bf16.mxu0 0
    %493 = vmatpush1.bf16.msra.mxu0 %v476
    %494 = vmatprep.subr.bf16.mxu0 0
    %495 = vmatpush2.bf16.msra.mxu0 0
    %496 = vmatprep.subr.bf16.mxu0 0
    %497 = vmatpush2.bf16.msra.mxu0 0
    %498 = vmatprep.subr.bf16.mxu0 0
    %499 = vmatpush2.bf16.msra.mxu0 0
    %500 = vmatprep.subr.bf16.mxu0 0
    %501 = vmatpush2.bf16.msra.mxu0 0
    %502 = vmatprep.subr.bf16.mxu0 0
    %503 = vmatpush2.bf16.msra.mxu0 0
    %504 = vmatprep.subr.bf16.mxu0 0
    %505 = vmatpush2.bf16.msra.mxu0 0
    %506 = vmatprep.subr.bf16.mxu0 0
    %507 = vmatpush2.bf16.msra.mxu0 0
    %508 = vmatprep.subr.bf16.mxu0 0
    %509 = vmatpush2.bf16.msra.mxu0 0
    %510 = vmatprep.mubr.bf16.mxu0 0
    %511 = vmatmul.mubr.bf16.gmra.mxu0 %v473
    %v512 = vpop.f32.mrf.mxu0
    %v513 = vadd.f32 0.0, %v512
    %v514 = vpop.f32.mrf.mxu0
    %v515 = vpop.f32.mrf.mxu0
    %v516 = vadd.f32 0.0, %v515
    %v517 = vpop.f32.mrf.mxu0
    %518 = vdwg.mxu0
    %520 = vrot.lane.b32.xlu0 %v392, 8
    %v521 = vpop.permute.xlu0 %520
    %524 = vrot.lane.b32.xlu0 %v513, 16
    %v525 = vpop.permute.xlu0 %524
    %528 = vrot.lane.b32.xlu0 %v516, 24
    %v529 = vpop.permute.xlu0 %528
    %v531 = vsel %vm275, %v389, %v521
    %vm532 = vcmask 130048
    %v533 = vsel %vm532, %v531, %v525
    %vm534 = vcmask 195584
    %v535 = vsel %vm534, %v533, %v529
    %v536 = vpack.c.bf16 %v535, %v535
    %v537 = vld [vmem:[#allocation9] sm:$0xf]
    %v538 = vld [vmem:[#allocation9 + $0x4] sm:$0xf]
    %v539 = vld [vmem:[#allocation9 + $0x8] sm:$0xf]
    %v540 = vld [vmem:[#allocation9 + $0xc] sm:$0xf]
    %v545 = vunpack.c.l.b16 %v537
    %v546 = vunpack.c.l.b16 %v538
    %v547 = vunpack.c.l.b16 %v539
    %v548 = vunpack.c.l.b16 %v540
    %v549 = vpack.c.b16 %v546, %v545
    %v550 = vpack.c.b16 %v548, %v547
    %v554 = vsel %vm154, %v536, 0
    %556 = vmatprep.subr.bf16.mxu0 0
    %557 = vmatpush1.bf16.msra.mxu0 0
    %558 = vmatprep.subr.bf16.mxu0 0
    %559 = vmatpush1.bf16.msra.mxu0 0
    %560 = vmatprep.subr.bf16.mxu0 0
    %561 = vmatpush1.bf16.msra.mxu0 0
    %562 = vmatprep.subr.bf16.mxu0 0
    %563 = vmatpush1.bf16.msra.mxu0 0
    %564 = vmatprep.subr.bf16.mxu0 0
    %565 = vmatpush1.bf16.msra.mxu0 0
    %566 = vmatprep.subr.bf16.mxu0 0
    %567 = vmatpush1.bf16.msra.mxu0 0
    %568 = vmatprep.subr.bf16.mxu0 0
    %569 = vmatpush1.bf16.msra.mxu0 %v550
    %570 = vmatprep.subr.bf16.mxu0 0
    %571 = vmatpush1.bf16.msra.mxu0 %v549
    %572 = vmatprep.subr.bf16.mxu0 0
    %573 = vmatpush2.bf16.msra.mxu0 0
    %574 = vmatprep.subr.bf16.mxu0 0
    %575 = vmatpush2.bf16.msra.mxu0 0
    %576 = vmatprep.subr.bf16.mxu0 0
    %577 = vmatpush2.bf16.msra.mxu0 0
    %578 = vmatprep.subr.bf16.mxu0 0
    %579 = vmatpush2.bf16.msra.mxu0 0
    %580 = vmatprep.subr.bf16.mxu0 0
    %581 = vmatpush2.bf16.msra.mxu0 0
    %582 = vmatprep.subr.bf16.mxu0 0
    %583 = vmatpush2.bf16.msra.mxu0 0
    %584 = vmatprep.subr.bf16.mxu0 0
    %585 = vmatpush2.bf16.msra.mxu0 0
    %586 = vmatprep.subr.bf16.mxu0 0
    %587 = vmatpush2.bf16.msra.mxu0 0
    %588 = vmatprep.mubr.bf16.mxu0 0
    %589 = vmatmul.mubr.bf16.gmra.mxu0 %v554
    %v590 = vpop.f32.mrf.mxu0
    %v591 = vadd.f32 0.0, %v590
    %v592 = vpop.f32.mrf.mxu0
    %v593 = vpop.f32.mrf.mxu0
    %v594 = vpop.f32.mrf.mxu0
    %595 = vdwg.mxu0
    %596 = vst [vmem:[#allocation12] sm:$0xff] %v591
    // Predicated region
    $region34: #{mixtral_attention.1} parent=1 // pred_check
      _
    $region35: #{mixtral_attention.1} parent=1 // pred_check_branch
      %598 = sbr.rel (0) target = $region37
    $region36: #{mixtral_attention.1} parent=1 // pred_region
      %s600 = ssub.s32 128, 128
      %601 = vsyncadd [#allocation6], %s600
      %s603 = sshll.u32 [#allocation12], 4
      %s604 = int_to_ptr.vmem [resolvable:$true] %s603
      %606 = dma.vmem_to_hbm [thread:$0]  %s604, 128, %s5, [#allocation6]
    $region37: #{mixtral_attention.1} parent=1 // pred_fallthru
      _
    // Predicated region
    $region38: #{mixtral_attention.1} parent=1 // pred_check
      _
    $region39: #{mixtral_attention.1} parent=1 // pred_check_branch
      %608 = sbr.rel (0) target = $region41
    $region40: #{mixtral_attention.1} parent=1 // pred_region
      %609 = dma.done [#allocation6], 128
    $region41: #{mixtral_attention.1} parent=1 // pred_fallthru
      _
    %610 = vsyncpa [#allocation5], 1
    %611 = vsyncpa [#allocation8], 1
    %612 = vsyncpa [#allocation11], 1
    %613 = vsyncpa [#allocation6], 1

</llo_original>
